<compile_context>
chip_gen: v5e
topology: v5e:2x2
jax: 0.10.0
libtpu: 0.0.40
codegen_flags: <defaults>
</compile_context>

<pallas_src>
import functools

import jax
import jax.numpy as jnp
from jax.experimental import pallas as pl
from jax.experimental.pallas import tpu as pltpu


def _chip_config():
    """Per-generation block-size / VMEM / buffering / grid-step policy."""
    kind = ""
    try:
        kind = jax.devices()[0].device_kind.lower()
    except Exception:
        pass

    if "v7" in kind or "7x" in kind:
        # 2 TensorCores, 64 MiB VMEM per TC, ~3.2 TB/s HBM.
        cfg = dict(target_bytes=16 << 20, vmem_cap=56 << 20,
                   min_grid_steps=4, input_buffers=3)
    elif "v6" in kind:
        # 1 TC, 128 MiB VMEM, ~1.4 TB/s HBM.
        cfg = dict(target_bytes=16 << 20, vmem_cap=96 << 20,
                   min_grid_steps=1, input_buffers=2)
    elif "v5e" in kind or "v5 lite" in kind or "v5lite" in kind:
        # 1 TC, 128 MiB VMEM, ~0.82 TB/s HBM: modest block bump is enough.
        cfg = dict(target_bytes=8 << 20, vmem_cap=96 << 20,
                   min_grid_steps=1, input_buffers=2)
    else:
        # Unknown / older (incl. megacore v4/v5p): conservative VMEM cap that
        # also fits a 64 MiB part, and >=2 grid steps so a "parallel" axis
        # can be sharded across cores if they exist.
        cfg = dict(target_bytes=8 << 20, vmem_cap=48 << 20,
                   min_grid_steps=2, input_buffers=2)

    # Refine the VMEM cap from the runtime if available (never raises).
    try:
        phys = getattr(pltpu.get_tpu_info(), "vmem_capacity_bytes", None)
        if phys:
            cfg["vmem_cap"] = min(cfg["vmem_cap"], int(phys) * 7 // 8)
    except Exception:
        pass
    return cfg


def _choose_tiles(B, T, C, itemsize, *, target_bytes, vmem_budget,
                  min_grid_steps):
    """Pick (Bb, Cb) for input block (Bb, T, Cb) / output block (Bb, Cb).

    Legality: last two dims of a block must be multiples of (8, 128) or equal
    the full array extent. Input block constrains (T, Cb) -> full T is always
    legal; output block constrains (Bb, Cb).
    """
    # Lane (C) tile: wide, 128-aligned lanes -> unmasked vector stores.
    if C % 128 == 0:
        cb = min(C, 2048)
    elif C > 128:
        # 128-multiple tile; the last block is a masked tail. Keeps the block
        # byte budget independent of a large, unaligned class count.
        cb = min((C // 128) * 128, 2048)
    else:
        cb = C  # small unaligned C: full extent is the only legal option

    def legal_bb(n):
        if n >= B:
            return B
        if B <= 8:
            return B
        return max(8, (n // 8) * 8)

    row_bytes = max(T * cb * itemsize, 1)
    bb = legal_bb(max(1, target_bytes // row_bytes))

    def block_bytes(bb_, cb_):
        return (bb_ * T * cb_ + bb_ * cb_) * itemsize

    # Fit one (input + output) block set inside the per-set VMEM budget.
    while block_bytes(bb, cb) > vmem_budget:
        if cb >= 256:
            cb = max(128, ((cb // 2) // 128) * 128)
        elif bb > 8:
            bb = legal_bb(bb // 2)
        else:
            break

    # Multi-TensorCore chips: guarantee enough grid steps to feed all cores,
    # preferring to split the 128-aligned C axis over the batch axis.
    def steps(bb_, cb_):
        return pl.cdiv(B, bb_) * pl.cdiv(C, cb_)

    while steps(bb, cb) < min_grid_steps:
        if cb >= 256:
            cb = max(128, ((cb // 2) // 128) * 128)
        elif bb > 8:
            bb = legal_bb(bb // 2)
        else:
            break

    return bb, cb


def _make_in_spec(block_shape, index_map, buffer_count):
    """Input BlockSpec, with N-deep buffering where supported (v7x)."""
    if buffer_count and buffer_count > 2:
        try:
            return pl.BlockSpec(block_shape, index_map,
                                pipeline_mode=pl.Buffered(buffer_count))
        except TypeError:
            pass  # older API without pipeline_mode: fall back to default
    return pl.BlockSpec(block_shape, index_map)


def _avg_consensus_kernel(x_ref, o_ref, *, inv_t):
    # x_ref: (Bb, T, Cb) tile; o_ref: (Bb, Cb) tile.
    # T is the sublane axis of each (T, Cb) slab -> native cross-sublane
    # (XLU) reduce, accumulated in f32; the 1/T scale is fused into the store.
    s = jnp.sum(x_ref[...], axis=1, dtype=jnp.float32)
    o_ref[...] = (s * inv_t).astype(o_ref.dtype)


def _avg_consensus(x, *, force_kernel=False):
    B, T, C = x.shape
    itemsize = jnp.dtype(x.dtype).itemsize
    total_bytes = B * T * C * itemsize

    # Tiny-input fast path: pallas_call dispatch overhead dwarfs the work.
    if not force_kernel and total_bytes < (1 << 20):
        return jnp.mean(x, axis=1, keepdims=True)

    cfg = _chip_config()
    bufs = cfg["input_buffers"]
    # Per (input + output) block-set budget so bufs*in + 2*out + headroom fits.
    set_budget = max((cfg["vmem_cap"] - (4 << 20)) // max(bufs, 2), 2 << 20)

    Bb, Cb = _choose_tiles(
        B, T, C, itemsize,
        target_bytes=min(cfg["target_bytes"], set_budget),
        vmem_budget=set_budget,
        min_grid_steps=cfg["min_grid_steps"],
    )

    grid = (pl.cdiv(B, Bb), pl.cdiv(C, Cb))

    in_bytes = Bb * T * Cb * itemsize
    out_bytes = Bb * Cb * itemsize
    need = bufs * in_bytes + 2 * out_bytes + (4 << 20)
    vmem_limit = int(min(max(need, 16 << 20), cfg["vmem_cap"]))

    cost = pl.CostEstimate(
        flops=B * T * C,
        transcendentals=0,
        bytes_accessed=(B * T * C + B * C) * itemsize,
    )

    kernel = functools.partial(_avg_consensus_kernel, inv_t=float(1.0 / T))

    out_2d = pl.pallas_call(
        kernel,
        out_shape=jax.ShapeDtypeStruct((B, C), x.dtype),
        grid_spec=pltpu.PrefetchScalarGridSpec(
            num_scalar_prefetch=0,
            grid=grid,
            in_specs=[_make_in_spec((Bb, T, Cb), lambda i, j: (i, 0, j), bufs)],
            out_specs=pl.BlockSpec((Bb, Cb), lambda i, j: (i, j)),
        ),
        compiler_params=pltpu.CompilerParams(
            dimension_semantics=("parallel", "parallel"),
            vmem_limit_bytes=vmem_limit,
        ),
        cost_estimate=cost,
    )(x)

    return out_2d.reshape(B, 1, C)


def consensus_module(x, consensus_type="avg", dim=1, *, force_kernel=False):
    """JAX/Pallas equivalent of ConsensusModule.forward for (B, T, C) input."""
    consensus_type = "identity" if consensus_type == "rnn" else consensus_type

    if consensus_type == "avg":
        assert dim == 1, "kernel implements the module default dim=1"
        return _avg_consensus(x, force_kernel=force_kernel)
    elif consensus_type == "identity":
        # No kernel launch: the module is a no-op here; avoid an HBM round-trip.
        return x
    else:
        # PyTorch module returns None for unknown consensus types.
        return None


if __name__ == "__main__":
    key = jax.random.PRNGKey(0)

    # 1) Small TSM-like shape: batch=2, num_segments=8, num_classes=32.
    #    Force the Pallas kernel so the hot path is actually exercised.
    B, T, C = 2, 8, 32
    x = jax.random.normal(key, (B, T, C), dtype=jnp.float32)
    y_avg = jax.block_until_ready(
        consensus_module(x, consensus_type="avg", dim=1, force_kernel=True))
    ref_avg = jnp.mean(x, axis=1, keepdims=True)
    assert y_avg.shape == (B, 1, C)
    assert jnp.allclose(y_avg, ref_avg, atol=1e-5, rtol=1e-5)

    # 2) Multi-block tiling + masked lane tail (C not a multiple of 128), bf16.
    B2, T2, C2 = 16, 8, 200
    x2 = jax.random.normal(jax.random.PRNGKey(1), (B2, T2, C2),
                           dtype=jnp.bfloat16)
    y2 = jax.block_until_ready(
        consensus_module(x2, consensus_type="avg", dim=1, force_kernel=True))
    ref2 = jnp.mean(x2.astype(jnp.float32), axis=1,
                    keepdims=True).astype(jnp.bfloat16)
    assert y2.shape == (B2, 1, C2)
    assert jnp.allclose(y2.astype(jnp.float32), ref2.astype(jnp.float32),
                        atol=2e-2, rtol=2e-2)

    # 3) Tiny-input auto fast path (no kernel launch) matches the reference.
    y_small = jax.block_until_ready(consensus_module(x, "avg", dim=1))
    assert jnp.allclose(y_small, ref_avg, atol=1e-5, rtol=1e-5)

    # 4) 'identity' path (also covers consensus_type == 'rnn'): no kernel.
    y_id = jax.block_until_ready(consensus_module(x, "identity", dim=1))
    assert y_id.shape == x.shape and jnp.allclose(y_id, x)
    y_rnn = jax.block_until_ready(consensus_module(x, "rnn", dim=1))
    assert jnp.allclose(y_rnn, x)

    print("KERNEL_OK")
</pallas_src>

<mosaic_0001>
module attributes {stable_mosaic.version = 11 : i64} {
  func.func @_avg_consensus_kernel(%arg0: i32, %arg1: i32, %arg2: memref<2x8x32xf32, #tpu.memory_space<vmem>>, %arg3: memref<2x32xf32, #tpu.memory_space<vmem>>) attributes {dimension_semantics = [#tpu.dimension_semantics<parallel>, #tpu.dimension_semantics<parallel>], iteration_bounds = array<i64: 1, 1>, scalar_prefetch = 0 : i64, scratch_operands = 0 : i64, tpu.core_type = #tpu.core_type<tc>, window_params = [{transform_indices = @transform_0, window_bounds = array<i64: 2, 8, 32>}, {transform_indices = @transform_1, window_bounds = array<i64: 2, 32>}]} {
    %c0 = arith.constant 0 : index
    %c0_0 = arith.constant 0 : index
    %c0_1 = arith.constant 0 : index
    %0 = vector.load %arg2[%c0, %c0_0, %c0_1] : memref<2x8x32xf32, #tpu.memory_space<vmem>>, vector<2x8x32xf32>
    %cst = arith.constant dense<0.000000e+00> : vector<2x32xf32>
    %1 = vector.multi_reduction <add>, %0, %cst [1] : vector<2x8x32xf32> to vector<2x32xf32>
    %cst_2 = arith.constant 1.250000e-01 : f32
    %2 = vector.broadcast %cst_2 : f32 to vector<2x32xf32>
    %3 = arith.mulf %1, %2 : vector<2x32xf32>
    %c0_3 = arith.constant 0 : index
    %c0_4 = arith.constant 0 : index
    %4 = vector.load %arg3[%c0_3, %c0_4] : memref<2x32xf32, #tpu.memory_space<vmem>>, vector<2x32xf32>
    tpu.vector_store %arg3[%c0_3, %c0_4], %3 {strides = array<i32>} : memref<2x32xf32, #tpu.memory_space<vmem>>, vector<2x32xf32>,
    return
  }
  func.func @transform_0(%arg0: i32, %arg1: i32) -> (i32, i32, i32) {
    %c0_i32 = arith.constant 0 : i32
    %c0_i32_0 = arith.constant 0 : i32
    return %arg0, %c0_i32, %arg1 : i32, i32, i32
  }
  func.func @transform_1(%arg0: i32, %arg1: i32) -> (i32, i32) {
    %c0_i32 = arith.constant 0 : i32
    return %arg0, %arg1 : i32, i32
  }
}

</mosaic_0001>

<llo_original>
// kernel: tpu_custom_call.1
$region0: #{tpu_custom_call.1}
  #allocation0 [shape = 'u32[]', space=smem, size = 0x4, offset = 0x4, fixed_abs, tag = 'smem constant byte address 0x4 - core index']
  #allocation1 [shape = 'u32[72,128]{1,0:T(1,128)}', space=vmem, size = 0x9000, scoped, tag = 'internal scratch']
  %s0 = inlined_call_operand.hbm [shape: f32[2,8,32], index: 0, kind: input, shape index: {}]
  %s1 = inlined_call_operand.hbm [shape: f32[2,32], index: 1, kind: output, shape index: {}]
  %s2 = sld [smem:[#allocation0]]
  $region18: #{tpu_custom_call.1} parent=0
    _
  %s4 = ssub.s32 1, %s2
  %s5 = scalar_select 0, %s4, %s2
  $region1: #{tpu_custom_call.1} parent=0
    #allocation2 [shape = 'u8[8192]{0}', space=vmem, size = 0x2000, scoped, tag = 'input window, operand 0, single buffered']
    #allocation3 [shape = 's32[1]{0}', space=sflag, size = 0x4, scoped, tag = 'scoped memory for tpu_custom_call.1']
    #allocation4 [shape = 's32[1]{0}', space=sflag, size = 0x4, scoped, tag = 'scoped memory for tpu_custom_call.1']
    #allocation5 [shape = 'u8[1024]{0}', space=vmem, size = 0x400, scoped, tag = 'output window, operand 0, single buffered']
    %6 = vsyncpa [#allocation3], 0
    %7 = vsyncpa [#allocation4], 0
    // Predicated region
    $region2: #{tpu_custom_call.1} parent=1 // pred_check
      _
    $region3: #{tpu_custom_call.1} parent=1 // pred_check_branch
      %9 = sbr.rel (0) target = $region5
    $region4: #{tpu_custom_call.1} parent=1 // pred_region
      %11 = vsyncadd [#allocation3], 0
      %s12 = sshll.u32 %s0, 4
      %s13 = int_to_ptr.hbm [resolvable:$true] %s12
      %s14 = sshll.u32 [#allocation2], 4
      %s15 = int_to_ptr.vmem [resolvable:$true] %s14
      %20 = dma.hbm_to_vmem [thread:$0]  %s13, 256, %s15, [#allocation3], 128, 128, 8
    $region5: #{tpu_custom_call.1} parent=1 // pred_fallthru
      _
    // Predicated region
    $region6: #{tpu_custom_call.1} parent=1 // pred_check
      _
    $region7: #{tpu_custom_call.1} parent=1 // pred_check_branch
      %22 = sbr.rel (0) target = $region9
    $region8: #{tpu_custom_call.1} parent=1 // pred_region
      %24 = dma.done [#allocation3], 256
    $region9: #{tpu_custom_call.1} parent=1 // pred_fallthru
      _
    %v25 = vld [vmem:[#allocation2] sm:$0xff]
    %v26 = vld [vmem:[#allocation2 + $0x8] sm:$0xff]
    %vm27 = vcmask 261120
    %v28 = vsel %vm27, %v25, 0.0
    %v29 = vrot.slane %v28, 4
    %v30 = vadd.f32 %v28, %v29
    %v31 = vrot.slane %v30, 2
    %v32 = vadd.f32 %v30, %v31
    %v33 = vrot.slane %v32, 1
    %v34 = vadd.f32 %v32, %v33
    %v35 = vsel %vm27, %v26, 0.0
    %v36 = vrot.slane %v35, 4
    %v37 = vadd.f32 %v35, %v36
    %v38 = vrot.slane %v37, 2
    %v39 = vadd.f32 %v37, %v38
    %v40 = vrot.slane %v39, 1
    %v41 = vadd.f32 %v39, %v40
    %v42 = vmul.f32 %v34, 0.125
    %v43 = vmul.f32 %v41, 0.125
    %vm46 = vcmask 1041409
    %v47 = vsel %vm46, %v43, %v42
    %vm49 = vcmask 254976
    %50 = vst.msk [vmem:[#allocation5] sm:$0x3] %vm49, %v47
    // Predicated region
    $region10: #{tpu_custom_call.1} parent=1 // pred_check
      _
    $region11: #{tpu_custom_call.1} parent=1 // pred_check_branch
      %52 = sbr.rel (0) target = $region13
    $region12: #{tpu_custom_call.1} parent=1 // pred_region
      %54 = vsyncadd [#allocation4], 0
      %s56 = sshll.u32 [#allocation5], 4
      %s57 = int_to_ptr.vmem [resolvable:$true] %s56
      %s58 = sshll.u32 %s1, 4
      %s59 = int_to_ptr.hbm [resolvable:$true] %s58
      %61 = dma.vmem_to_hbm [thread:$0]  %s57, 32, %s59, [#allocation4]
    $region13: #{tpu_custom_call.1} parent=1 // pred_fallthru
      _
    // Predicated region
    $region14: #{tpu_custom_call.1} parent=1 // pred_check
      _
    $region15: #{tpu_custom_call.1} parent=1 // pred_check_branch
      %63 = sbr.rel (0) target = $region17
    $region16: #{tpu_custom_call.1} parent=1 // pred_region
      %65 = dma.done [#allocation4], 32
    $region17: #{tpu_custom_call.1} parent=1 // pred_fallthru
      _
    %66 = vsyncpa [#allocation3], 1
    %67 = vsyncpa [#allocation4], 1

</llo_original>
